<compile_context>
chip_gen: v5e
topology: v5e:2x2
jax: 0.10.0
libtpu: 0.0.40
codegen_flags: <defaults>
</compile_context>

<pallas_src>
import functools

import jax
import jax.numpy as jnp
from jax.experimental import pallas as pl
from jax.experimental.pallas import tpu as pltpu


# ----------------------------- helpers ------------------------------------ #

def _round_up(x, m):
    return (x + m - 1) // m * m


def _pad_rows(x, n_pad):
    n = x.shape[0]
    if n_pad == n:
        return x
    pad = [(0, n_pad - n)] + [(0, 0)] * (x.ndim - 1)
    return jnp.pad(x, pad)


def _row_mask(tn, n_actual):
    """(TN, 1) f32 mask selecting rows that belong to the un-padded batch."""
    row = jax.lax.broadcasted_iota(jnp.int32, (tn, 1), 0) + pl.program_id(0) * tn
    return (row < n_actual).astype(jnp.float32)


def _write_partial(out_ref, partial):
    """Write a scalar partial sum into a lane-dense (1, 8, 128) output tile."""
    out_ref[...] = jnp.broadcast_to(partial.astype(out_ref.dtype), out_ref.shape)


# ----------------------------- kernels ------------------------------------ #

def _hard_kernel(pred_ref, tgt_ref, out_ref, *, n_actual, tn):
    """label_smooth is None branch: partial of sum_i (logsumexp_i - gather_i)."""
    eps = 1e-12
    pred = pred_ref[...].astype(jnp.float32)                 # (TN, C)
    tgt = tgt_ref[...]                                       # (TN, 1) int32
    c = pred.shape[1]

    # gather(1, target): one-hot select along the class (lane) axis.
    col = jax.lax.broadcasted_iota(jnp.int32, (tn, c), 1)
    onehot = (col == tgt).astype(jnp.float32)
    g = jnp.sum(pred * onehot, axis=1, keepdims=True)        # (TN, 1)

    # torch: log(exp(pred + eps).sum(dim=1))  (no max-subtraction, on purpose)
    l = jnp.log(jnp.sum(jnp.exp(pred + eps), axis=1, keepdims=True))  # (TN, 1)

    partial = jnp.sum((l - g) * _row_mask(tn, n_actual))
    _write_partial(out_ref, partial)


def _smooth_loss_partial(pred, tgt, w, *, n_actual, tn):
    m = jnp.max(pred, axis=1, keepdims=True)
    logprobs = pred - m - jnp.log(
        jnp.sum(jnp.exp(pred - m), axis=1, keepdims=True))
    prod = tgt * logprobs
    if w is not None:
        prod = prod * w                                      # (1, C) broadcast
    loss = -jnp.sum(prod, axis=1, keepdims=True)             # (TN, 1)
    return jnp.sum(loss * _row_mask(tn, n_actual))


def _smooth_dense_kernel(pred_ref, tgt_ref, *refs, label_smooth, class_num,
                         n_actual, tn, has_weight):
    """label_smooth branch, dense (N, C) float target (original torch form)."""
    if has_weight:
        w_ref, out_ref = refs
        w = w_ref[...].astype(jnp.float32)
    else:
        (out_ref,) = refs
        w = None
    pred = pred_ref[...].astype(jnp.float32)                 # (TN, C)
    tgt = jnp.clip(tgt_ref[...].astype(jnp.float32),
                   label_smooth / (class_num - 1),
                   1.0 - label_smooth)
    _write_partial(out_ref,
                   _smooth_loss_partial(pred, tgt, w, n_actual=n_actual, tn=tn))


def _smooth_index_kernel(pred_ref, tgt_ref, *refs, label_smooth, class_num,
                         n_actual, tn, has_weight):
    """label_smooth branch, integer-label fast path (builds the smoothed
    one-hot distribution in-kernel; equals clamp(one_hot, lo, hi))."""
    if has_weight:
        w_ref, out_ref = refs
        w = w_ref[...].astype(jnp.float32)
    else:
        (out_ref,) = refs
        w = None
    pred = pred_ref[...].astype(jnp.float32)                 # (TN, C)
    c = pred.shape[1]
    col = jax.lax.broadcasted_iota(jnp.int32, (tn, c), 1)
    onehot = col == tgt_ref[...]                             # (TN, C) bool
    off_val = jnp.float32(label_smooth / (class_num - 1))
    on_val = jnp.float32(1.0 - label_smooth)
    tgt = jnp.where(onehot, on_val, off_val)
    _write_partial(out_ref,
                   _smooth_loss_partial(pred, tgt, w, n_actual=n_actual, tn=tn))


# ----------------------------- wrapper ------------------------------------ #

class Part2Loss:
    """Pallas-TPU port of the PyTorch Part2Loss module (forward only)."""

    def __init__(self, label_smooth=None, class_num=137, weight=None,
                 block_rows=None, vmem_limit_bytes=48 * 1024 * 1024):
        self.label_smooth = label_smooth
        self.class_num = class_num
        self.weight = weight
        self.block_rows = block_rows           # override row-tile size (tests)
        self.vmem_limit_bytes = vmem_limit_bytes

    def _choose_tn(self, n, c):
        if self.block_rows is not None:
            tn = int(self.block_rows)
        else:
            # ~4 MiB f32 pred tile; with the target stream + double buffering
            # this stays well inside v7x's 64 MiB physical VMEM.
            budget = 4 * 1024 * 1024
            tn = min(1024, max(8, budget // max(1, c * 4)))
        tn = _round_up(max(8, min(tn, _round_up(n, 8))), 8)
        return tn

    def __call__(self, pred, target):
        n, c = pred.shape
        tn = self._choose_tn(n, c)
        n_pad = _round_up(n, tn)
        num_blocks = n_pad // tn

        # Keep pred in its native dtype (e.g. bf16); cast to f32 per-tile in VMEM.
        pred_p = _pad_rows(pred, n_pad)

        pred_spec = pl.BlockSpec((tn, c), lambda i: (i, 0))
        out_shape = jax.ShapeDtypeStruct((num_blocks, 8, 128), jnp.float32)
        out_spec = pl.BlockSpec((1, 8, 128), lambda i: (i, 0, 0))
        cparams = pltpu.CompilerParams(
            dimension_semantics=("parallel",),
            vmem_limit_bytes=self.vmem_limit_bytes)

        if self.label_smooth is None:
            tgt = _pad_rows(jnp.asarray(target).astype(jnp.int32).reshape(n, 1),
                            n_pad)
            kern = functools.partial(_hard_kernel, n_actual=n, tn=tn)
            partials = pl.pallas_call(
                kern,
                out_shape=out_shape,
                grid=(num_blocks,),
                in_specs=[pred_spec,
                          pl.BlockSpec((tn, 1), lambda i: (i, 0))],
                out_specs=out_spec,
                compiler_params=cparams,
            )(pred_p, tgt)
            # (N, N) broadcast-mean quirk == (sum(lse) - sum(gather)) / N.
            return jnp.sum(partials[:, 0, 0]) / n

        # ---- label-smoothing branch ----
        has_weight = self.weight is not None
        tgt_arr = jnp.asarray(target)
        is_index = jnp.issubdtype(tgt_arr.dtype, jnp.integer)

        inputs = [pred_p]
        in_specs = [pred_spec]
        if is_index:
            tgt = _pad_rows(tgt_arr.astype(jnp.int32).reshape(n, 1), n_pad)
            in_specs.append(pl.BlockSpec((tn, 1), lambda i: (i, 0)))
            kern_fn = _smooth_index_kernel
        else:
            tgt = _pad_rows(tgt_arr, n_pad)        # dense (N, C), native dtype
            in_specs.append(pl.BlockSpec((tn, c), lambda i: (i, 0)))
            kern_fn = _smooth_dense_kernel
        inputs.append(tgt)

        if has_weight:
            w = jnp.asarray(self.weight, jnp.float32).reshape(1, c)
            inputs.append(w)
            in_specs.append(pl.BlockSpec((1, c), lambda i: (0, 0)))

        kern = functools.partial(
            kern_fn,
            label_smooth=float(self.label_smooth),
            class_num=int(self.class_num),
            n_actual=n, tn=tn, has_weight=has_weight)

        partials = pl.pallas_call(
            kern,
            out_shape=out_shape,
            grid=(num_blocks,),
            in_specs=in_specs,
            out_specs=out_spec,
            compiler_params=cparams,
        )(*inputs)
        return jnp.sum(partials[:, 0, 0]) / n


# --------------------------- references (pure JAX) ------------------------- #

def _ref_hard(pred, target):
    eps = 1e-12
    g = jnp.take_along_axis(pred, target[:, None], axis=1)   # (N, 1)
    l = jnp.log(jnp.sum(jnp.exp(pred + eps), axis=1))        # (N,)
    loss = -1.0 * g + l                                      # (N, N) broadcast
    return loss.mean()


def _ref_smooth(pred, target, label_smooth, class_num, weight=None):
    logprobs = jax.nn.log_softmax(pred, axis=1)
    t = jnp.clip(target.astype(jnp.float32),
                 label_smooth / (class_num - 1), 1.0 - label_smooth)
    prod = t * logprobs
    if weight is not None:
        prod = prod * weight
    return (-1.0 * jnp.sum(prod, axis=1)).mean()


# ------------------------------- main -------------------------------------- #

if __name__ == "__main__":
    key = jax.random.PRNGKey(0)
    k1, k2, k3, k4 = jax.random.split(key, 4)

    # --- hard branch: N not a multiple of the row tile -> multi-block grid
    #     with masked padded rows. ---
    N1, C1 = 20, 16
    pred1 = jax.random.normal(k1, (N1, C1), dtype=jnp.float32)
    tgt1 = jax.random.randint(k2, (N1,), 0, C1, dtype=jnp.int32)
    hard = Part2Loss(label_smooth=None, class_num=C1, block_rows=8)
    out_hard = jax.block_until_ready(hard(pred1, tgt1))
    ref_hard = _ref_hard(pred1, tgt1)
    assert jnp.allclose(out_hard, ref_hard, atol=1e-5, rtol=1e-5), (
        out_hard, ref_hard)

    # --- smoothing branch, dense float targets (original torch form). ---
    N2, C2 = 24, 16
    pred2 = jax.random.normal(k3, (N2, C2), dtype=jnp.float32)
    tgt_idx2 = jax.random.randint(k4, (N2,), 0, C2, dtype=jnp.int32)
    tgt_dense2 = jax.nn.one_hot(tgt_idx2, C2, dtype=jnp.float32)
    sm = Part2Loss(label_smooth=0.1, class_num=C2, block_rows=8)
    out_sm = jax.block_until_ready(sm(pred2, tgt_dense2))
    ref_sm = _ref_smooth(pred2, tgt_dense2, 0.1, C2)
    assert jnp.allclose(out_sm, ref_sm, atol=1e-5, rtol=1e-5), (out_sm, ref_sm)

    # --- smoothing branch, integer-label fast path (no dense target stream). ---
    out_idx = jax.block_until_ready(sm(pred2, tgt_idx2))
    assert jnp.allclose(out_idx, ref_sm, atol=1e-5, rtol=1e-5), (out_idx, ref_sm)

    # --- smoothing branch with per-class weight. ---
    w = jnp.linspace(0.5, 1.5, C2, dtype=jnp.float32)
    smw = Part2Loss(label_smooth=0.1, class_num=C2, weight=w, block_rows=8)
    out_w = jax.block_until_ready(smw(pred2, tgt_dense2))
    ref_w = _ref_smooth(pred2, tgt_dense2, 0.1, C2, weight=w.reshape(1, C2))
    assert jnp.allclose(out_w, ref_w, atol=1e-5, rtol=1e-5), (out_w, ref_w)

    print("KERNEL_OK")
</pallas_src>

<mosaic_0001>
module attributes {stable_mosaic.version = 11 : i64} {
  func.func @_hard_kernel(%arg0: i32, %arg1: memref<8x16xf32, #tpu.memory_space<vmem>>, %arg2: memref<8x1xi32, #tpu.memory_space<vmem>>, %arg3: memref<1x8x128xf32, #tpu.memory_space<vmem>>) attributes {dimension_semantics = [#tpu.dimension_semantics<parallel>], iteration_bounds = array<i64: 3>, scalar_prefetch = 0 : i64, scratch_operands = 0 : i64, tpu.core_type = #tpu.core_type<tc>, window_params = [{transform_indices = @transform_0, window_bounds = array<i64: 8, 16>}, {transform_indices = @transform_1, window_bounds = array<i64: 8, 1>}, {transform_indices = @transform_2, window_bounds = array<i64: 1, 8, 128>}]} {
    %c0 = arith.constant 0 : index
    %c0_0 = arith.constant 0 : index
    %0 = vector.load %arg1[%c0, %c0_0] : memref<8x16xf32, #tpu.memory_space<vmem>>, vector<8x16xf32>
    %c0_1 = arith.constant 0 : index
    %c0_2 = arith.constant 0 : index
    %1 = vector.load %arg2[%c0_1, %c0_2] : memref<8x1xi32, #tpu.memory_space<vmem>>, vector<8x1xi32>
    %2 = tpu.iota {dimensions = array<i32: 1>} : vector<8x16xi32>
    %3 = vector.broadcast %1 : vector<8x1xi32> to vector<8x16xi32>
    %4 = arith.cmpi eq, %2, %3 : vector<8x16xi32>
    %5 = arith.extui %4 : vector<8x16xi1> to vector<8x16xi32>
    %6 = arith.sitofp %5 : vector<8x16xi32> to vector<8x16xf32>
    %7 = arith.mulf %0, %6 : vector<8x16xf32>
    %cst = arith.constant dense<0.000000e+00> : vector<8xf32>
    %8 = vector.multi_reduction <add>, %7, %cst [1] : vector<8x16xf32> to vector<8xf32>
    %9 = vector.shape_cast %8 : vector<8xf32> to vector<8x1xf32>
    %cst_3 = arith.constant 9.99999996E-13 : f32
    %10 = vector.broadcast %cst_3 : f32 to vector<8x16xf32>
    %11 = arith.addf %0, %10 : vector<8x16xf32>
    %12 = math.exp %11 : vector<8x16xf32>
    %cst_4 = arith.constant dense<0.000000e+00> : vector<8xf32>
    %13 = vector.multi_reduction <add>, %12, %cst_4 [1] : vector<8x16xf32> to vector<8xf32>
    %14 = vector.shape_cast %13 : vector<8xf32> to vector<8x1xf32>
    %15 = math.log %14 : vector<8x1xf32>
    %16 = arith.subf %15, %9 : vector<8x1xf32>
    %17 = tpu.iota {dimensions = array<i32: 0>} : vector<8x1xi32>
    %c8_i32 = arith.constant 8 : i32
    %18 = arith.muli %arg0, %c8_i32 : i32
    %19 = vector.broadcast %18 : i32 to vector<8x1xi32>
    %20 = arith.addi %17, %19 : vector<8x1xi32>
    %c20_i32 = arith.constant 20 : i32
    %21 = vector.broadcast %c20_i32 : i32 to vector<8x1xi32>
    %22 = arith.cmpi slt, %20, %21 : vector<8x1xi32>
    %23 = arith.extui %22 : vector<8x1xi1> to vector<8x1xi32>
    %24 = arith.sitofp %23 : vector<8x1xi32> to vector<8x1xf32>
    %25 = arith.mulf %16, %24 : vector<8x1xf32>
    %26 = vector.shape_cast %25 : vector<8x1xf32> to vector<1x8x1xf32>
    %cst_5 = arith.constant dense<0.000000e+00> : vector<1xf32>
    %27 = vector.multi_reduction <add>, %26, %cst_5 [1, 2] : vector<1x8x1xf32> to vector<1xf32>
    %28 = vector.shape_cast %27 : vector<1xf32> to vector<1x1x1xf32>
    %29 = vector.extract %28[0, 0, 0] : f32 from vector<1x1x1xf32>
    %30 = vector.broadcast %29 : f32 to vector<1x8x128xf32>
    %c0_6 = arith.constant 0 : index
    %c0_7 = arith.constant 0 : index
    %c0_8 = arith.constant 0 : index
    %31 = vector.load %arg3[%c0_6, %c0_7, %c0_8] : memref<1x8x128xf32, #tpu.memory_space<vmem>>, vector<1x8x128xf32>
    tpu.vector_store %arg3[%c0_6, %c0_7, %c0_8], %30 {strides = array<i32>} : memref<1x8x128xf32, #tpu.memory_space<vmem>>, vector<1x8x128xf32>,
    return
  }
  func.func @transform_0(%arg0: i32) -> (i32, i32) {
    %c0_i32 = arith.constant 0 : i32
    %c0_i32_0 = arith.constant 0 : i32
    return %arg0, %c0_i32 : i32, i32
  }
  func.func @transform_1(%arg0: i32) -> (i32, i32) {
    %c0_i32 = arith.constant 0 : i32
    %c0_i32_0 = arith.constant 0 : i32
    return %arg0, %c0_i32 : i32, i32
  }
  func.func @transform_2(%arg0: i32) -> (i32, i32, i32) {
    %c0_i32 = arith.constant 0 : i32
    %c0_i32_0 = arith.constant 0 : i32
    %c0_i32_1 = arith.constant 0 : i32
    return %arg0, %c0_i32, %c0_i32_0 : i32, i32, i32
  }
}

</mosaic_0001>

<llo_original>
// kernel: tpu_custom_call.1
$region0: #{tpu_custom_call.1}
  #allocation0 [shape = 'u32[]', space=smem, size = 0x4, offset = 0x4, fixed_abs, tag = 'smem constant byte address 0x4 - core index']
  #allocation1 [shape = 'u32[72,128]{1,0:T(1,128)}', space=vmem, size = 0x9000, scoped, tag = 'internal scratch']
  %s0 = inlined_call_operand.vmem [shape: f32[24,16], index: 0, kind: input, shape index: {}]
  %s1 = inlined_call_operand.vmem [shape: s32[24,1], index: 1, kind: input, shape index: {}]
  %s2 = inlined_call_operand.hbm [shape: f32[3,8,128], index: 2, kind: output, shape index: {}]
  %s3 = sld [smem:[#allocation0]]
  $region41: #{tpu_custom_call.1} parent=0
    _
  %s5 = ssub.s32 1, %s3
  %s6 = scalar_select 0, %s5, %s3
  $region1: #{tpu_custom_call.1} parent=0
    #allocation2 [shape = 'u8[8192]{0}', space=vmem, size = 0x2000, scoped, tag = 'output window, operand 0']
    #allocation3 [shape = 's32[2]{0}', space=sflag, size = 0x8, scoped, tag = 'scoped memory for tpu_custom_call.1']
    %7 = vsyncpa [#allocation3], 0
    %s8 = scalar_lea.sflag [#allocation3], 1
    %9 = vsyncpa %s8, 0
    loop: start=0, step=1, limit=5
    $region2: #{tpu_custom_call.1} parent=1 // loop_pre_header
      _
    $region3: #{tpu_custom_call.1} parent=1 // loop_header
      %s11 = sphi 0, %s15
      %p12 = scmp.ge.s32.totalorder %s11, 5
      %s21 = sphi 0, %s23
      %s24 = sphi 0, %s21
      %s25 = sphi 0, %s24
      %s41 = sphi 0, %s25
      %s47 = sphi 0, %s49
      %s50 = sphi 0, %s47
      %s51 = sphi 0, %s50
      %s67 = sphi 0, %s51
      %s73 = sphi 0, %s75
      %s76 = sphi 0, %s73
      %s77 = sphi 0, %s76
      %s93 = sphi 0, %s77
    $region4: #{tpu_custom_call.1} parent=1 // loop_header_branch
      %14 = sbr.rel (%p12) target = $region8
    $region5: #{tpu_custom_call.1} parent=1 // loop_body
      %s16 = ssub.s32 %s11, 1
      %s17 = ssub.s32 %s11, 2
      %s18 = sadd.s32 %s11, 1
      %s19 = ssub.s32 %s11, %s18
      %p20 = scmp.eq.s32.totalorder %s19, 0
      %s22 = sadd.s32 %s21, 1
      %s23 = scalar_select %p20, %s21, %s22
      %p26 = pneg %p20
      %p27 = scmp.eq.s32.totalorder %s11, 2
      %p28 = por %p26, %p27
      %p29 = scmp.ne.s32.totalorder %s21, %s24
      %p30 = scmp.eq.s32.totalorder %s11, 0
      %p31 = por %p29, %p30
      %p32 = scmp.ne.s32.totalorder %s21, %s24
      %p33 = scmp.eq.s32.totalorder %s16, 2
      %p34 = por %p32, %p33
      %p35 = scmp.ne.s32.totalorder %s24, %s25
      %p36 = scmp.eq.s32.totalorder %s16, 0
      %p37 = por %p35, %p36
      %p38 = scmp.ne.s32.totalorder %s24, %s25
      %p39 = scmp.eq.s32.totalorder %s17, 2
      %p40 = por %p38, %p39
      %p42 = scmp.ne.s32.totalorder %s25, %s41
      %p43 = scmp.eq.s32.totalorder %s17, 0
      %p44 = por %p42, %p43
      %s45 = ssub.s32 %s11, %s18
      %p46 = scmp.eq.s32.totalorder %s45, 0
      %s48 = sadd.s32 %s47, 1
      %s49 = scalar_select %p46, %s47, %s48
      %p52 = pneg %p46
      %p53 = scmp.eq.s32.totalorder %s11, 2
      %p54 = por %p52, %p53
      %p55 = scmp.ne.s32.totalorder %s47, %s50
      %p56 = scmp.eq.s32.totalorder %s11, 0
      %p57 = por %p55, %p56
      %p58 = scmp.ne.s32.totalorder %s47, %s50
      %p59 = scmp.eq.s32.totalorder %s16, 2
      %p60 = por %p58, %p59
      %p61 = scmp.ne.s32.totalorder %s50, %s51
      %p62 = scmp.eq.s32.totalorder %s16, 0
      %p63 = por %p61, %p62
      %p64 = scmp.ne.s32.totalorder %s50, %s51
      %p65 = scmp.eq.s32.totalorder %s17, 2
      %p66 = por %p64, %p65
      %p68 = scmp.ne.s32.totalorder %s51, %s67
      %p69 = scmp.eq.s32.totalorder %s17, 0
      %p70 = por %p68, %p69
      %s71 = ssub.s32 %s11, %s18
      %p72 = scmp.eq.s32.totalorder %s71, 0
      %s74 = sadd.s32 %s73, 1
      %s75 = scalar_select %p72, %s73, %s74
      %p78 = pneg %p72
      %p79 = scmp.eq.s32.totalorder %s11, 2
      %p80 = por %p78, %p79
      %p81 = scmp.ne.s32.totalorder %s73, %s76
      %p82 = scmp.eq.s32.totalorder %s11, 0
      %p83 = por %p81, %p82
      %p84 = scmp.ne.s32.totalorder %s73, %s76
      %p85 = scmp.eq.s32.totalorder %s16, 2
      %p86 = por %p84, %p85
      %p87 = scmp.ne.s32.totalorder %s76, %s77
      %p88 = scmp.eq.s32.totalorder %s16, 0
      %p89 = por %p87, %p88
      %p90 = scmp.ne.s32.totalorder %s76, %s77
      %p91 = scmp.eq.s32.totalorder %s17, 2
      %p92 = por %p90, %p91
      %p94 = scmp.ne.s32.totalorder %s77, %s93
      %p95 = scmp.eq.s32.totalorder %s17, 0
      %p96 = por %p94, %p95
      %p97 = scmp.le.s32.totalorder 1, %s11
      %p98 = scmp.lt.s32.totalorder %s11, 4
      %p99 = pnand %p97, %p98
      %p100 = pneg %p99
      // Predicated region
      $region9: #{tpu_custom_call.1} parent=5 // pred_check
        _
      $region10: #{tpu_custom_call.1} parent=5 // pred_check_branch
        %102 = sbr.rel (%p99) target = $region12
      $region11: #{tpu_custom_call.1} parent=5 // pred_region
        %s103 = ssub.s32 %s11, 1
      $region12: #{tpu_custom_call.1} parent=5 // pred_fallthru
        _
      %p104 = scmp.lt.s32.totalorder %s11, 3
      // Predicated region
      $region13: #{tpu_custom_call.1} parent=5 // pred_check
        %p105 = pneg %p104
      $region14: #{tpu_custom_call.1} parent=5 // pred_check_branch
        %107 = sbr.rel (%p105) target = $region16
      $region15: #{tpu_custom_call.1} parent=5 // pred_region
        // Predicated region
        $region17: #{tpu_custom_call.1} parent=15 // pred_check
          %p108 = pneg %p31
        $region18: #{tpu_custom_call.1} parent=15 // pred_check_branch
          %110 = sbr.rel (%p108) target = $region20
        $region19: #{tpu_custom_call.1} parent=15 // pred_region
          %p111 = scmp.lt.s32.totalorder %s11, 2
          %s112 = scalar_select %p111, %s11, 2
          %s113 = smul.addr %s112, 8
          %s114 = scalar_lea.vmem %s0, %s113
        $region20: #{tpu_custom_call.1} parent=15 // pred_fallthru
          _
        // Predicated region
        $region21: #{tpu_custom_call.1} parent=15 // pred_check
          %p115 = pneg %p57
        $region22: #{tpu_custom_call.1} parent=15 // pred_check_branch
          %117 = sbr.rel (%p115) target = $region24
        $region23: #{tpu_custom_call.1} parent=15 // pred_region
          %p118 = scmp.lt.s32.totalorder %s11, 2
          %s119 = scalar_select %p118, %s11, 2
          %s120 = smul.addr %s119, 8
          %s121 = scalar_lea.vmem %s1, %s120
        $region24: #{tpu_custom_call.1} parent=15 // pred_fallthru
          _
      $region16: #{tpu_custom_call.1} parent=5 // pred_fallthru
        _
      %p122 = scmp.le.s32.totalorder 1, %s11
      %p123 = scmp.lt.s32.totalorder %s11, 4
      %p124 = pnand %p122, %p123
      %p125 = pneg %p124
      // Predicated region
      $region25: #{tpu_custom_call.1} parent=5 // pred_check
        _
      $region26: #{tpu_custom_call.1} parent=5 // pred_check_branch
        %127 = sbr.rel (%p124) target = $region28
      $region27: #{tpu_custom_call.1} parent=5 // pred_region
        %s128 = ssub.s32 %s11, 1
        %p129 = scmp.lt.s32.totalorder %s16, 2
        %s130 = scalar_select %p129, %s16, 2
        %s131 = smul.addr %s130, 8
        %s132 = scalar_lea.vmem %s0, %s131
        %p133 = pneg %p37
        %p134 = pneg %p34
        %p135 = scmp.lt.s32.totalorder %s16, 2
        %s136 = scalar_select %p135, %s16, 2
        %s137 = smul.addr %s136, 8
        %s138 = scalar_lea.vmem %s1, %s137
        %p139 = pneg %p63
        %p140 = pneg %p60
        %p141 = pneg %p89
        %p142 = pneg %p86
        %s143 = sand.u32 %s76, 1
        %s144 = scalar_lea.sflag [#allocation3], %s143
        %s145 = sand.u32 %s76, 1
        %s146 = smul.addr %s145, 8
        %s147 = scalar_lea.vmem [#allocation2], %s146
        %p148 = scmp.lt.s32.totalorder %s16, 2
        %s149 = scalar_select %p148, %s16, 2
        %s150 = smul.addr %s149, 8
        %s151 = scalar_lea.vmem %s0, %s150
        %p152 = scmp.lt.s32.totalorder %s16, 2
        %s153 = scalar_select %p152, %s16, 2
        %s154 = smul.addr %s153, 8
        %s155 = scalar_lea.vmem %s1, %s154
        %v156 = vld [vmem:[%s151] sm:$0xff]
        %v157 = vld [vmem:[%s155] sm:$0xff]
        %v158 = vlaneseq
        %v159 = vand.u32 %v158, 127
        %160 = vset.pattern.permute.xlu0 0
        %161 = vperm.xlu0 %160, %v157
        %v162 = vpop.permute.xlu0 %161
        %vm163 = vcmp.eq.s32.totalorder %v159, %v162
        %v164 = vsel %vm163, 1, 0
        %v165 = vcvt.s32.f32 %v164
        %v166 = vmul.f32 %v156, %v165
        %vm167 = vcmask 130048
        %v168 = vsel %vm167, %v166, 0.0
        %169 = vadd.xlane.f32.xlu0 %v168
        %v170 = vpop.xlane.xlu0 %169
        %v171 = vadd.f32 %v156, 1e-12
        %v172 = vmul.f32 %v171, 1.442695
        %v173 = vpow.pop %v172
        %v174 = vsel %vm167, %v173, 0.0
        %175 = vadd.xlane.f32.xlu0 %v174
        %v176 = vpop.xlane.xlu0 %175
        %v177 = vlog2.pop %v176
        %v178 = vmul.f32 %v177, 0.6931472
        %v179 = vsub.f32 %v178, %v170
        %v180 = vlaneseq
        %v181 = vshrl.u32 %v180, 7
        %s182 = smul.u32 %s16, 8
        %v183 = vstv %s182
        %v184 = vadd.s32 %v181, %v183
        %vm185 = vcmp.lt.s32.totalorder %v184, 20
        %v186 = vsel %vm185, 1, 0
        %v187 = vcvt.s32.f32 %v186
        %v188 = vmul.f32 %v179, %v187
        %vm189 = vcmask 7168
        %v190 = vsel %vm189, %v188, 0.0
        %191 = vadd.xlane.f32.xlu0 %v190
        %v192 = vpop.xlane.xlu0 %191
        %v193 = vrot.slane %v192, 4
        %v194 = vadd.f32 %v192, %v193
        %v195 = vrot.slane %v194, 2
        %v196 = vadd.f32 %v194, %v195
        %v197 = vrot.slane %v196, 1
        %v198 = vadd.f32 %v196, %v197
        %s199 = vtos %v198
        %v200 = vstv %s199
        %201 = vst [vmem:[%s147] sm:$0xff] %v200
        %s202 = sand.u32 %s76, 1
        %s203 = scalar_lea.sflag [#allocation3], %s202
        %s204 = sand.u32 %s76, 1
        %s205 = smul.addr %s204, 8
        %s206 = scalar_lea.vmem [#allocation2], %s205
        // Predicated region
        $region29: #{tpu_custom_call.1} parent=27 // pred_check
          %p207 = pneg %p86
        $region30: #{tpu_custom_call.1} parent=27 // pred_check_branch
          %209 = sbr.rel (%p207) target = $region32
        $region31: #{tpu_custom_call.1} parent=27 // pred_region
          %211 = vsyncadd %s203, 0
          %s212 = smul.addr %s16, 8
          %s213 = scalar_lea.hbm %s2, %s212
          %s215 = sshll.u32 %s206, 4
          %s216 = int_to_ptr.vmem [resolvable:$true] %s215
          %s217 = sshll.u32 %s213, 4
          %s218 = int_to_ptr.hbm [resolvable:$true] %s217
          %220 = dma.vmem_to_hbm [thread:$0]  %s216, 128, %s218, %s203
        $region32: #{tpu_custom_call.1} parent=27 // pred_fallthru
          _
      $region28: #{tpu_custom_call.1} parent=5 // pred_fallthru
        _
      %p221 = scmp.le.s32.totalorder 2, %s11
      // Predicated region
      $region33: #{tpu_custom_call.1} parent=5 // pred_check
        %p222 = pneg %p221
      $region34: #{tpu_custom_call.1} parent=5 // pred_check_branch
        %224 = sbr.rel (%p222) target = $region36
      $region35: #{tpu_custom_call.1} parent=5 // pred_region
        %s225 = ssub.s32 %s11, 2
        // Predicated region
        $region37: #{tpu_custom_call.1} parent=35 // pred_check
          %p226 = pneg %p92
        $region38: #{tpu_custom_call.1} parent=35 // pred_check_branch
          %228 = sbr.rel (%p226) target = $region40
        $region39: #{tpu_custom_call.1} parent=35 // pred_region
          %s229 = sand.u32 %s77, 1
          %s230 = scalar_lea.sflag [#allocation3], %s229
          %s231 = sand.u32 %s77, 1
          %s232 = smul.addr %s231, 8
          %s233 = scalar_lea.vmem [#allocation2], %s232
          %235 = dma.done %s230, 128
        $region40: #{tpu_custom_call.1} parent=35 // pred_fallthru
          _
      $region36: #{tpu_custom_call.1} parent=5 // pred_fallthru
        _
    $region6: #{tpu_custom_call.1} parent=1 // loop_footer
      %s15 = sadd.s32 1, %s11
    $region7: #{tpu_custom_call.1} parent=1 // loop_footer_branch
      %10 = sbr.rel target = $region3
    $region8: #{tpu_custom_call.1} parent=1 // loop_exit
      _
    %236 = vsyncpa [#allocation3], 1
    %s237 = scalar_lea.sflag [#allocation3], 1
    %238 = vsyncpa %s237, 1

</llo_original>
